<compile_context>
chip_gen: v5e
topology: v5e:2x2
jax: 0.10.0
libtpu: 0.0.40
codegen_flags: <defaults>
</compile_context>

<pallas_src>
import functools

import jax
import jax.numpy as jnp
from jax.experimental import pallas as pl
from jax.experimental.pallas import tpu as pltpu

Q = 0.7
EPSILON = 1e-6
_LANES = 128
_SUBLANES = 8


def _round_up(x: int, m: int) -> int:
    return ((x + m - 1) // m) * m


def _gce_kernel(logits_ref, target_ref, out_ref, *, q, eps, num_rows):
    tb, c = logits_ref.shape

    x = logits_ref[...]                                   # (TB, C), raw dtype
    targets = target_ref[...]                             # (TB, 1) int32

    # Row max in the source dtype (exact for any float), promoted to f32.
    m = jnp.max(x, axis=-1, keepdims=True).astype(jnp.float32)       # (TB, 1)
    # Numerically stable exponentials; the normalized softmax matrix is never
    # materialized — only the target column is needed.
    e = jnp.exp(x.astype(jnp.float32) - m)                             # (TB, C)
    denom = jnp.sum(e, axis=-1, keepdims=True)                         # (TB, 1)

    # Gather the target logit from the *raw* logits with a one-hot mask
    # (exactly one class matches per row, so the masked sum is an exact gather
    # and costs half the vreg traffic of masking the f32 exponentials when the
    # input is bf16).
    class_ids = jax.lax.broadcasted_iota(jnp.int32, (tb, c), 1)
    logit_t = jnp.sum(jnp.where(class_ids == targets, x, jnp.zeros_like(x)),
                      axis=-1, keepdims=True).astype(jnp.float32)      # (TB, 1)

    # p_t = softmax(x)[target] + eps.  Exact (non-approx) reciprocal: this is
    # only a (TB, 1) column, and the approx path's ~2^-12 error previously
    # broke the accuracy check.
    p_t = jnp.exp(logit_t - m) * pl.reciprocal(denom, approx=False) + eps

    # Box-Cox term (1 - p^q) / q.  (TB, 1) column epilogue — lane-sparse on
    # the EUP; acceptable except for very small C (see module TODO).
    loss_rows = (1.0 - jnp.exp(q * jnp.log(p_t))) * (1.0 / q)          # (TB, 1)

    # Zero out batch-padding rows of the (possibly ragged) last block.  The
    # padded rows hold unspecified data; jnp.where does not propagate their
    # NaNs/Infs, so this mask must stay *after* all per-row math.
    row_ids = (pl.program_id(0) * tb
               + jax.lax.broadcasted_iota(jnp.int32, (tb, 1), 0))
    loss_rows = jnp.where(row_ids < num_rows, loss_rows, 0.0)

    partial = jnp.sum(loss_rows)
    # Lane-dense (1, 128) broadcast write (unmasked vst); the wrapper divides
    # the grand total by 128 * B.
    out_ref[...] = jnp.full((1, _LANES), partial, dtype=jnp.float32)


def generalized_cross_entropy(logits: jax.Array, targets: jax.Array,
                              *, q: float = Q, eps: float = EPSILON) -> jax.Array:
    """logits: (B, C) float, targets: (B,) int -> scalar float32 mean loss."""
    B, C = logits.shape
    itemsize = jnp.dtype(logits.dtype).itemsize

    # Whole class axis must live in one block (no C-tiling fallback yet).
    # TODO(synk): add C-tiling + online softmax for very large vocabularies.
    if 2 * _SUBLANES * C * (itemsize + 2 * 4) > 40 * 1024 * 1024:
        raise NotImplementedError(
            "class axis too large for a single VMEM block (needs C-tiling)")

    # --- batch-tile sizing ---------------------------------------------------
    # Target ~6 MiB of *input* per block.  Total per-step VMEM is roughly
    #   2 x input block (double buffering) + ~2 x full-size f32 intermediates,
    # i.e. <= ~36 MiB for bf16 inputs: safe on v7x's 64 MiB physical VMEM,
    # trivially inside v5e/v6e's 128 MiB, and large enough to amortize the
    # ~0.35 us per-grid-step overhead (>=85% of the HBM roofline).
    in_block_budget = 6 * 1024 * 1024
    tb = (in_block_budget // max(1, C * itemsize)) // _SUBLANES * _SUBLANES
    tb = max(_SUBLANES, tb)
    tb = min(tb, _round_up(B, _SUBLANES))
    num_tiles = pl.cdiv(B, tb)
    # v7x has 2 TensorCores; a "parallel" grid only shards across them when
    # there are >= 2 tiles, so split a single full-batch tile in half.
    if num_tiles < 2 and tb > _SUBLANES:
        tb = max(_SUBLANES, _round_up(pl.cdiv(tb, 2), _SUBLANES))
        num_tiles = pl.cdiv(B, tb)

    # VMEM limit: double-buffered input + f32 intermediates + headroom, capped
    # below v7x's physical budget.
    est = (2 * tb * C * itemsize        # double-buffered logits blocks
           + 2 * tb * C * 4             # conservative full-size f32 temps
           + 4 * tb * _SUBLANES         # targets blocks + column temps
           + 2 * _LANES * 4)            # output blocks
    vmem_limit = int(min(max(2 * est, 4 * 1024 * 1024), 48 * 1024 * 1024))

    # No wrapper-side jnp.pad of logits: the pl.cdiv grid + in-kernel row mask
    # handles the ragged last block without an extra HBM pass.
    targets2d = targets.astype(jnp.int32).reshape(B, 1)

    kernel = functools.partial(_gce_kernel, q=q, eps=eps, num_rows=B)

    partials = pl.pallas_call(
        kernel,
        out_shape=jax.ShapeDtypeStruct((1, num_tiles * _LANES), jnp.float32),
        grid_spec=pltpu.PrefetchScalarGridSpec(
            num_scalar_prefetch=0,
            grid=(num_tiles,),
            in_specs=[
                pl.BlockSpec((tb, C), lambda i: (i, 0)),
                pl.BlockSpec((tb, 1), lambda i: (i, 0)),
            ],
            out_specs=pl.BlockSpec((1, _LANES), lambda i: (0, i)),
        ),
        compiler_params=pltpu.CompilerParams(
            dimension_semantics=("parallel",),
            vmem_limit_bytes=vmem_limit,
        ),
    )(logits, targets2d)

    # Every lane of each (1, 128) block holds the same per-tile partial sum, so
    # a flat sum / (128 * B) finishes the mean without any strided gather.
    return jnp.sum(partials) / (_LANES * B)


def gce_reference(logits, targets, q=Q, eps=EPSILON):
    p = jax.nn.softmax(logits.astype(jnp.float32), axis=1)
    p_t = p[jnp.arange(p.shape[0]), targets] + eps
    return jnp.mean((1.0 - p_t ** q) / q)


if __name__ == "__main__":
    key = jax.random.PRNGKey(0)
    k1, k2, k3, k4 = jax.random.split(key, 4)

    # Case 1: canonical small shapes (minibatch, C) = (8, 32).
    B1, C1 = 8, 32
    logits1 = jax.random.normal(k1, (B1, C1), dtype=jnp.float32)
    targets1 = jax.random.randint(k2, (B1,), 0, C1, dtype=jnp.int32)
    loss1 = generalized_cross_entropy(logits1, targets1)
    jax.block_until_ready(loss1)
    ref1 = gce_reference(logits1, targets1)
    assert jnp.allclose(loss1, ref1, atol=1e-5, rtol=1e-5), (loss1, ref1)

    # Case 2: non-tile-aligned batch -> multi-tile grid + masked ragged block.
    B2, C2 = 37, 160
    logits2 = jax.random.normal(k3, (B2, C2), dtype=jnp.float32)
    targets2 = jax.random.randint(k4, (B2,), 0, C2, dtype=jnp.int32)
    loss2 = generalized_cross_entropy(logits2, targets2)
    jax.block_until_ready(loss2)
    ref2 = gce_reference(logits2, targets2)
    assert jnp.allclose(loss2, ref2, atol=1e-5, rtol=1e-5), (loss2, ref2)

    print("KERNEL_OK")
</pallas_src>

<mosaic_0001>
module attributes {stable_mosaic.version = 11 : i64} {
  func.func @_gce_kernel(%arg0: i32, %arg1: memref<8x32xf32, #tpu.memory_space<vmem>>, %arg2: memref<8x1xi32, #tpu.memory_space<vmem>>, %arg3: memref<1x128xf32, #tpu.memory_space<vmem>>) attributes {dimension_semantics = [#tpu.dimension_semantics<parallel>], iteration_bounds = array<i64: 1>, scalar_prefetch = 0 : i64, scratch_operands = 0 : i64, tpu.core_type = #tpu.core_type<tc>, window_params = [{transform_indices = @transform_0, window_bounds = array<i64: 8, 32>}, {transform_indices = @transform_1, window_bounds = array<i64: 8, 1>}, {transform_indices = @transform_2, window_bounds = array<i64: 1, 128>}]} {
    %c0 = arith.constant 0 : index
    %c0_0 = arith.constant 0 : index
    %0 = vector.load %arg1[%c0, %c0_0] : memref<8x32xf32, #tpu.memory_space<vmem>>, vector<8x32xf32>
    %c0_1 = arith.constant 0 : index
    %c0_2 = arith.constant 0 : index
    %1 = vector.load %arg2[%c0_1, %c0_2] : memref<8x1xi32, #tpu.memory_space<vmem>>, vector<8x1xi32>
    %cst = arith.constant dense<0xFF800000> : vector<8xf32>
    %2 = vector.multi_reduction <maximumf>, %0, %cst [1] : vector<8x32xf32> to vector<8xf32>
    %3 = vector.shape_cast %2 : vector<8xf32> to vector<8x1xf32>
    %4 = vector.broadcast %3 : vector<8x1xf32> to vector<8x32xf32>
    %5 = arith.subf %0, %4 : vector<8x32xf32>
    %6 = math.exp %5 : vector<8x32xf32>
    %cst_3 = arith.constant dense<0.000000e+00> : vector<8xf32>
    %7 = vector.multi_reduction <add>, %6, %cst_3 [1] : vector<8x32xf32> to vector<8xf32>
    %8 = vector.shape_cast %7 : vector<8xf32> to vector<8x1xf32>
    %9 = tpu.iota {dimensions = array<i32: 1>} : vector<8x32xi32>
    %10 = vector.broadcast %1 : vector<8x1xi32> to vector<8x32xi32>
    %11 = arith.cmpi eq, %9, %10 : vector<8x32xi32>
    %cst_4 = arith.constant 0.000000e+00 : f32
    %12 = vector.broadcast %cst_4 : f32 to vector<8x32xf32>
    %13 = arith.select %11, %0, %12 : vector<8x32xi1>, vector<8x32xf32>
    %cst_5 = arith.constant dense<0.000000e+00> : vector<8xf32>
    %14 = vector.multi_reduction <add>, %13, %cst_5 [1] : vector<8x32xf32> to vector<8xf32>
    %15 = vector.shape_cast %14 : vector<8xf32> to vector<8x1xf32>
    %16 = arith.subf %15, %3 : vector<8x1xf32>
    %17 = math.exp %16 : vector<8x1xf32>
    %18 = tpu.reciprocal %8 : vector<8x1xf32> -> vector<8x1xf32>
    %19 = arith.mulf %17, %18 : vector<8x1xf32>
    %cst_6 = arith.constant 9.99999997E-7 : f32
    %20 = vector.broadcast %cst_6 : f32 to vector<8x1xf32>
    %21 = arith.addf %19, %20 : vector<8x1xf32>
    %22 = math.log %21 : vector<8x1xf32>
    %cst_7 = arith.constant 0.699999988 : f32
    %23 = vector.broadcast %cst_7 : f32 to vector<8x1xf32>
    %24 = arith.mulf %23, %22 : vector<8x1xf32>
    %25 = math.exp %24 : vector<8x1xf32>
    %cst_8 = arith.constant 1.000000e+00 : f32
    %26 = vector.broadcast %cst_8 : f32 to vector<8x1xf32>
    %27 = arith.subf %26, %25 : vector<8x1xf32>
    %cst_9 = arith.constant 1.42857146 : f32
    %28 = vector.broadcast %cst_9 : f32 to vector<8x1xf32>
    %29 = arith.mulf %27, %28 : vector<8x1xf32>
    %c8_i32 = arith.constant 8 : i32
    %30 = arith.muli %arg0, %c8_i32 : i32
    %31 = tpu.iota {dimensions = array<i32: 0>} : vector<8x1xi32>
    %32 = vector.broadcast %30 : i32 to vector<8x1xi32>
    %33 = arith.addi %32, %31 : vector<8x1xi32>
    %c8_i32_10 = arith.constant 8 : i32
    %34 = vector.broadcast %c8_i32_10 : i32 to vector<8x1xi32>
    %35 = arith.cmpi slt, %33, %34 : vector<8x1xi32>
    %cst_11 = arith.constant 0.000000e+00 : f32
    %36 = vector.broadcast %cst_11 : f32 to vector<8x1xf32>
    %37 = arith.select %35, %29, %36 : vector<8x1xi1>, vector<8x1xf32>
    %38 = vector.shape_cast %37 : vector<8x1xf32> to vector<1x8x1xf32>
    %cst_12 = arith.constant dense<0.000000e+00> : vector<1xf32>
    %39 = vector.multi_reduction <add>, %38, %cst_12 [1, 2] : vector<1x8x1xf32> to vector<1xf32>
    %40 = vector.shape_cast %39 : vector<1xf32> to vector<1x1x1xf32>
    %41 = vector.extract %40[0, 0, 0] : f32 from vector<1x1x1xf32>
    %42 = vector.broadcast %41 : f32 to vector<1x128xf32>
    %c0_13 = arith.constant 0 : index
    %c0_14 = arith.constant 0 : index
    %43 = vector.load %arg3[%c0_13, %c0_14] : memref<1x128xf32, #tpu.memory_space<vmem>>, vector<1x128xf32>
    tpu.vector_store %arg3[%c0_13, %c0_14], %42 {strides = array<i32>} : memref<1x128xf32, #tpu.memory_space<vmem>>, vector<1x128xf32>,
    return
  }
  func.func @transform_0(%arg0: i32) -> (i32, i32) {
    %c0_i32 = arith.constant 0 : i32
    %c0_i32_0 = arith.constant 0 : i32
    return %arg0, %c0_i32 : i32, i32
  }
  func.func @transform_1(%arg0: i32) -> (i32, i32) {
    %c0_i32 = arith.constant 0 : i32
    %c0_i32_0 = arith.constant 0 : i32
    return %arg0, %c0_i32 : i32, i32
  }
  func.func @transform_2(%arg0: i32) -> (i32, i32) {
    %c0_i32 = arith.constant 0 : i32
    %c0_i32_0 = arith.constant 0 : i32
    return %c0_i32, %arg0 : i32, i32
  }
}

</mosaic_0001>

<llo_original>
// kernel: tpu_custom_call.1
$region0: #{tpu_custom_call.1}
  #allocation0 [shape = 'u32[]', space=smem, size = 0x4, offset = 0x4, fixed_abs, tag = 'smem constant byte address 0x4 - core index']
  #allocation1 [shape = 'u32[72,128]{1,0:T(1,128)}', space=vmem, size = 0x9000, scoped, tag = 'internal scratch']
  %s0 = inlined_call_operand.vmem [shape: f32[8,32], index: 0, kind: input, shape index: {}]
  %s1 = inlined_call_operand.vmem [shape: s32[8,1], index: 1, kind: input, shape index: {}]
  %s2 = inlined_call_operand.hbm [shape: f32[1,128], index: 2, kind: output, shape index: {}]
  %s3 = sld [smem:[#allocation0]]
  $region18: #{tpu_custom_call.1} parent=0
    _
  %s5 = ssub.s32 1, %s3
  %s6 = scalar_select 0, %s5, %s3
  $region1: #{tpu_custom_call.1} parent=0
    #allocation2 [shape = 'u8[512]{0}', space=vmem, size = 0x400, scoped, tag = 'output window, operand 0, single buffered']
    #allocation3 [shape = 's32[1]{0}', space=sflag, size = 0x4, scoped, tag = 'scoped memory for tpu_custom_call.1']
    %7 = vsyncpa [#allocation3], 0
    // Predicated region
    $region2: #{tpu_custom_call.1} parent=1 // pred_check
      _
    $region3: #{tpu_custom_call.1} parent=1 // pred_check_branch
      %9 = sbr.rel (0) target = $region5
    $region4: #{tpu_custom_call.1} parent=1 // pred_region
      _
    $region5: #{tpu_custom_call.1} parent=1 // pred_fallthru
      _
    // Predicated region
    $region6: #{tpu_custom_call.1} parent=1 // pred_check
      _
    $region7: #{tpu_custom_call.1} parent=1 // pred_check_branch
      %11 = sbr.rel (0) target = $region9
    $region8: #{tpu_custom_call.1} parent=1 // pred_region
      _
    $region9: #{tpu_custom_call.1} parent=1 // pred_fallthru
      _
    %v12 = vld [vmem:[%s0] sm:$0xff]
    %v13 = vld [vmem:[%s1] sm:$0xff]
    %vm14 = vcmask 261120
    %v15 = vsel %vm14, %v12, -inf
    %16 = vmax.xlane.f32.xlu0 %v15
    %v17 = vpop.xlane.xlu0 %16
    %v18 = vsub.f32 %v12, %v17
    %v19 = vmul.f32 %v18, 1.442695
    %v20 = vpow.pop %v19
    %v21 = vsel %vm14, %v20, 0.0
    %22 = vadd.xlane.f32.xlu0 %v21
    %v23 = vpop.xlane.xlu0 %22
    %v24 = vlaneseq
    %v25 = vand.u32 %v24, 127
    %26 = vset.pattern.permute.xlu0 0
    %27 = vperm.xlu0 %26, %v13
    %v28 = vpop.permute.xlu0 %27
    %vm29 = vcmp.eq.s32.totalorder %v25, %v28
    %v30 = vsel %vm29, %v12, 0.0
    %v31 = vsel %vm14, %v30, 0.0
    %32 = vadd.xlane.f32.xlu0 %v31
    %v33 = vpop.xlane.xlu0 %32
    %v34 = vsub.f32 %v33, %v17
    %v35 = vmul.f32 %v34, 1.442695
    %v36 = vpow.pop %v35
    %v37 = vrcp.pop %v23
    %v38 = vmul.f32 %v23, %v37
    %v39 = vsub.f32 1.0, %v38
    %v40 = vmul.f32 %v37, %v39
    %v41 = vadd.f32 %v37, %v40
    %vm42 = vweird.f32 %v23
    %vm43 = vweird.f32 %v37
    %vm44 = vmor %vm42, %vm43
    %v45 = vsel %vm44, %v37, %v41
    %v46 = vand.u32 2147483647, %v23
    %vm47 = vcmp.eq.f32.partialorder %v46, 8.507059e+37
    %v48 = vand.u32 %v23, 2147483648
    %v49 = vor.u32 1.1754944e-38, %v48
    %v50 = vsel %vm47, %v49, %v45
    %v51 = vmul.f32 %v36, %v50
    %v52 = vadd.f32 %v51, 1e-06
    %v53 = vlog2.pop %v52
    %v54 = vmul.f32 %v53, 0.6931472
    %v55 = vmul.f32 %v54, 0.7
    %v56 = vmul.f32 %v55, 1.442695
    %v57 = vpow.pop %v56
    %v58 = vsub.f32 1.0, %v57
    %v59 = vmul.f32 %v58, 1.4285715
    %s60 = smul.u32 0, 8
    %v61 = vlaneseq
    %v62 = vshrl.u32 %v61, 7
    %v63 = vstv %s60
    %v64 = vadd.s32 %v63, %v62
    %vm65 = vcmp.lt.s32.totalorder %v64, 8
    %v66 = vsel %vm65, %v59, 0.0
    %vm67 = vcmask 7168
    %v68 = vsel %vm67, %v66, 0.0
    %69 = vadd.xlane.f32.xlu0 %v68
    %v70 = vpop.xlane.xlu0 %69
    %v71 = vrot.slane %v70, 4
    %v72 = vadd.f32 %v70, %v71
    %v73 = vrot.slane %v72, 2
    %v74 = vadd.f32 %v72, %v73
    %v75 = vrot.slane %v74, 1
    %v76 = vadd.f32 %v74, %v75
    %s77 = vtos %v76
    %v78 = vstv %s77
    %79 = vst [vmem:[#allocation2] sm:$0x1] %v78
    // Predicated region
    $region10: #{tpu_custom_call.1} parent=1 // pred_check
      _
    $region11: #{tpu_custom_call.1} parent=1 // pred_check_branch
      %81 = sbr.rel (0) target = $region13
    $region12: #{tpu_custom_call.1} parent=1 // pred_region
      %83 = vsyncadd [#allocation3], 0
      %s85 = sshll.u32 [#allocation2], 4
      %s86 = int_to_ptr.vmem [resolvable:$true] %s85
      %s87 = sshll.u32 %s2, 4
      %s88 = int_to_ptr.hbm [resolvable:$true] %s87
      %90 = dma.vmem_to_hbm [thread:$0]  %s86, 16, %s88, [#allocation3]
    $region13: #{tpu_custom_call.1} parent=1 // pred_fallthru
      _
    // Predicated region
    $region14: #{tpu_custom_call.1} parent=1 // pred_check
      _
    $region15: #{tpu_custom_call.1} parent=1 // pred_check_branch
      %92 = sbr.rel (0) target = $region17
    $region16: #{tpu_custom_call.1} parent=1 // pred_region
      %94 = dma.done [#allocation3], 16
    $region17: #{tpu_custom_call.1} parent=1 // pred_fallthru
      _
    %95 = vsyncpa [#allocation3], 1

</llo_original>
